<compile_context>
chip_gen: v5e
topology: v5e:2x2
jax: 0.10.0
libtpu: 0.0.40
codegen_flags: <defaults>
</compile_context>

<pallas_src>
import jax
import jax.numpy as jnp
from jax.experimental import pallas as pl
from jax.experimental.pallas import tpu as pltpu


# ----------------------------------------------------------------------------
# Pallas kernel: encoder state update + broadcast-store of the constant
# attention row.  One (TM, H) row-tile per grid step; pure elementwise + one
# H-reduce, fully HBM-bandwidth bound.
# ----------------------------------------------------------------------------
def _autonomic_block_kernel(
    scal_ref,                                   # SMEM (5,) f32 scalar params
    xA_ref, xB_ref, pA_ref, pB_ref, x0_ref,     # VMEM (TM,H) x4, (TM,1)  streamed
    attn_row_ref,                               # VMEM (1,H) f32          resident
    oxA_ref, oxB_ref, opA_ref, opB_ref, ox0_ref, oattn_ref,
):
    f32 = jnp.float32
    c_A = scal_ref[0]      # fu_A * sin(omega*t + phi)   (hoisted to wrapper)
    c_B = scal_ref[1]      # fu_B * sin(omega*t + phi)
    lam = scal_ref[2]
    eta = scal_ref[3]
    zeta = scal_ref[4]

    # Stream in native dtype, compute in f32.
    x_A = xA_ref[...].astype(f32)
    x_B = xB_ref[...].astype(f32)
    p_A = pA_ref[...].astype(f32)
    p_B = pB_ref[...].astype(f32)
    x0 = x0_ref[...].astype(f32)

    # --- AutonomicBasePairEncoder -------------------------------------------
    new_x_A = x_A + c_A + lam * (p_A - (x_A - x_B))
    new_x_B = x_B - c_B + lam * (p_B - (x_B - x_A))
    d = new_x_A - new_x_B                       # reused: momentum update + norm
    e = eta * d
    new_p_A = p_A - e                           # == p_A + eta*(new_x_B - new_x_A)
    new_p_B = p_B + e                           # == p_B + eta*(new_x_A - new_x_B)
    diff = jnp.sqrt(jnp.sum(d * d, axis=-1, keepdims=True))   # L2 norm, keepdim
    new_x0 = x0 + zeta * (diff - x0)

    # --- outputs --------------------------------------------------------------
    oxA_ref[...] = new_x_A.astype(oxA_ref.dtype)
    oxB_ref[...] = new_x_B.astype(oxB_ref.dtype)
    opA_ref[...] = new_p_A.astype(opA_ref.dtype)
    opB_ref[...] = new_p_B.astype(opB_ref.dtype)
    ox0_ref[...] = new_x0.astype(ox0_ref.dtype)

    # Attention head + LayerNorm + FFN: combined == 0 exactly (single head,
    # shared weights), so the whole path reduces to one precomputed row.
    oattn_ref[...] = jnp.broadcast_to(
        attn_row_ref[...], oattn_ref.shape).astype(oattn_ref.dtype)


# ----------------------------------------------------------------------------
# Generation-aware VMEM budget + row-tile sizing (same budget feeds both TM
# and vmem_limit_bytes, per the review).
# ----------------------------------------------------------------------------
def _round_up(x, m):
    return ((x + m - 1) // m) * m


def _vmem_budget_bytes():
    # ~75% of physical per-core VMEM, capped at 112 MiB:
    #   v5e / v6e (128 MiB) -> 96 MiB,  v7x (64 MiB) -> 48 MiB.
    try:
        cap = int(pltpu.get_tpu_info().vmem_capacity_bytes)
    except Exception:
        cap = 64 * 1024 * 1024          # conservative (v7x-sized) fallback
    return int(min(cap * 3 // 4, 112 * 1024 * 1024))


def _pick_row_tile(n_rows, hidden, state_bytes, budget_bytes):
    # Streamed bytes per row per pipeline buffer, with lane widths rounded up
    # to 128 (narrow tiles still occupy full 128-lane vregs / VMEM tiles):
    #   4 wide state inputs + 4 wide state outputs  (state dtype)
    #   x0 in + x0 out (width-1, padded to 128 lanes, state dtype)
    #   attn output (f32)
    lane_h = max(_round_up(hidden, 128), 128)
    per_row = (8 * lane_h + 2 * 128) * state_bytes + lane_h * 4
    n_buf = 2                                   # BlockSpec default double-buffering
    resident = 2 * 8 * lane_h * 4               # (1,H) f32 attn row, 2 bufs, sublane-padded
    usable = max(budget_bytes * 9 // 10 - resident, per_row * n_buf * 8)
    tm = usable // (per_row * n_buf)
    tm = int(max(8, min(tm, 8192)))             # big tiles amortize per-step overhead
    tm = (tm // 8) * 8
    if n_rows <= tm:
        return n_rows                           # block == full array dim is always legal
    return tm


# ----------------------------------------------------------------------------
# Wrapper: scalar prep, constant attention row, pallas_call
# ----------------------------------------------------------------------------
def autonomic_attention_block(state, t, params):
    x_A, x_B, p_A, p_B, x0 = state
    B, Sq, H = x_A.shape
    N = B * Sq
    f32 = jnp.float32
    sdt = x_A.dtype
    sbytes = jnp.dtype(sdt).itemsize

    # Stream in the caller's dtype — no wrapper-side astype / extra HBM pass.
    xA2 = x_A.reshape(N, H)
    xB2 = x_B.reshape(N, H)
    pA2 = p_A.reshape(N, H)
    pB2 = p_B.reshape(N, H)
    x02 = x0.reshape(N, 1)

    # --- scalar-only encoder math hoisted out of the kernel ------------------
    s = jnp.sin(jnp.asarray(params["omega"], f32) * t + jnp.asarray(params["phi"], f32))
    scal = jnp.stack([
        jnp.asarray(params["fu_A"], f32) * s,
        jnp.asarray(params["fu_B"], f32) * s,
        jnp.asarray(params["lam"], f32),
        jnp.asarray(params["eta"], f32),
        jnp.asarray(params["zeta"], f32),
    ]).astype(f32)

    # --- attention / LN / FFN path collapses to ONE constant row -------------
    # Single head, shared mixing weights => active_signal == 0 exactly,
    # combined == 0, LayerNorm(0) == ln_bias, FFN(ln_bias) is token-independent.
    # TODO(synk): reference FFN is .double(); TPU has no f64, computed in f32.
    ln_b = jnp.asarray(params["ln_bias"], f32).reshape(H)
    W1 = jnp.asarray(params["ffn_w1"], f32)     # nn.Linear layout (out, in)
    b1 = jnp.asarray(params["ffn_b1"], f32)
    W2 = jnp.asarray(params["ffn_w2"], f32)
    b2 = jnp.asarray(params["ffn_b2"], f32)
    h = jnp.maximum(ln_b @ W1.T + b1, 0.0)      # dropout = identity (eval mode)
    attn_row = (h @ W2.T + b2).reshape(1, H).astype(f32)

    budget = _vmem_budget_bytes()
    TM = _pick_row_tile(N, H, sbytes, budget)
    grid = (pl.cdiv(N, TM),)

    row_h = pl.BlockSpec((TM, H), lambda i: (i, 0))
    row_1 = pl.BlockSpec((TM, 1), lambda i: (i, 0))
    res_1h = pl.BlockSpec((1, H), lambda i: (0, 0))     # VMEM-resident constant row
    smem = pl.BlockSpec(memory_space=pltpu.MemorySpace.SMEM)

    out_shapes = (
        jax.ShapeDtypeStruct((N, H), sdt),   # new_x_A
        jax.ShapeDtypeStruct((N, H), sdt),   # new_x_B
        jax.ShapeDtypeStruct((N, H), sdt),   # new_p_A
        jax.ShapeDtypeStruct((N, H), sdt),   # new_p_B
        jax.ShapeDtypeStruct((N, 1), sdt),   # new_x0
        jax.ShapeDtypeStruct((N, H), f32),   # attn_output
    )

    outs = pl.pallas_call(
        _autonomic_block_kernel,
        out_shape=out_shapes,
        grid=grid,
        in_specs=[smem,
                  row_h, row_h, row_h, row_h, row_1,
                  res_1h],
        out_specs=(row_h, row_h, row_h, row_h, row_1, row_h),
        # in-place state update: xA2->new_x_A, ..., x02->new_x0
        input_output_aliases={1: 0, 2: 1, 3: 2, 4: 3, 5: 4},
        compiler_params=pltpu.CompilerParams(
            dimension_semantics=("parallel",),      # 2x across TCs on v7x
            vmem_limit_bytes=budget,                # same budget used to size TM
        ),
    )(scal, xA2, xB2, pA2, pB2, x02, attn_row)

    nxA, nxB, npA, npB, nx0, attn = outs
    new_state = (
        nxA.reshape(B, Sq, H),
        nxB.reshape(B, Sq, H),
        npA.reshape(B, Sq, H),
        npB.reshape(B, Sq, H),
        nx0.reshape(B, Sq, 1),
    )
    return new_state, attn.reshape(B, Sq, H)


# ----------------------------------------------------------------------------
# Pure-JAX reference (mirrors the PyTorch forward, full LN/FFN path) used to
# verify that the constant-row shortcut is exact.
# ----------------------------------------------------------------------------
def reference_forward(state, t, params):
    x_A, x_B, p_A, p_B, x0 = [a.astype(jnp.float32) for a in state]
    s = jnp.sin(params["omega"] * t + params["phi"])
    nxA = x_A + params["fu_A"] * s + params["lam"] * (p_A - (x_A - x_B))
    nxB = x_B - params["fu_B"] * s + params["lam"] * (p_B - (x_B - x_A))
    npA = p_A + params["eta"] * (nxB - nxA)
    npB = p_B + params["eta"] * (nxA - nxB)
    diff = jnp.linalg.norm(nxA - nxB, axis=-1, keepdims=True)
    nx0 = x0 + params["zeta"] * (diff - x0)

    eff_mask = jax.nn.softmax(params["state_mask"])
    w = jax.nn.softmax(params["state_ratio"] * eff_mask)
    mass_raw = w[0] * nxA + w[1] * nxB + w[2] * npA + w[3] * npB
    group_mass = mass_raw + nx0
    gml = mass_raw + nx0
    active = gml - group_mass
    L = params["alpha"] * jax.nn.sigmoid(params["tau"] * params["head_mass"]) + params["beta"]
    S = jax.nn.sigmoid(params["gamma"] * (gml - nx0) + params["delta"])
    combined = active * L * S

    mean = jnp.mean(combined, axis=-1, keepdims=True)
    var = jnp.mean((combined - mean) ** 2, axis=-1, keepdims=True)
    normed = (combined - mean) / jnp.sqrt(var + 1e-5)
    normed = normed * params["ln_weight"] + params["ln_bias"]
    h = jnp.maximum(normed @ params["ffn_w1"].T + params["ffn_b1"], 0.0)
    attn = h @ params["ffn_w2"].T + params["ffn_b2"]
    return (nxA, nxB, npA, npB, nx0), attn


if __name__ == "__main__":
    B, Sq, H = 2, 8, 32
    key = jax.random.PRNGKey(0)
    ks = jax.random.split(key, 10)

    x_A = jax.random.normal(ks[0], (B, Sq, H), jnp.float32)
    x_B = jax.random.normal(ks[1], (B, Sq, H), jnp.float32)
    p_A = jax.random.normal(ks[2], (B, Sq, H), jnp.float32)
    p_B = jax.random.normal(ks[3], (B, Sq, H), jnp.float32)
    x0 = jax.random.normal(ks[4], (B, Sq, 1), jnp.float32)
    state = (x_A, x_B, p_A, p_B, x0)
    t = 1.0

    # Deterministic parameters (module __init__ defaults; linear layers from PRNG)
    params = dict(
        # encoder
        fu_A=0.1, fu_B=-0.2, lam=0.05, eta=0.01, zeta=0.1, omega=1.0, phi=0.0,
        # attention head
        state_ratio=jnp.ones((4,), jnp.float32),
        state_mask=jnp.zeros((4,), jnp.float32),
        head_mass=1.0, tau=1.0, gamma=1.0, delta=0.0, alpha=1.0, beta=0.1,
        # layernorm (default init)
        ln_weight=jnp.ones((H,), jnp.float32),
        ln_bias=jnp.zeros((H,), jnp.float32),
        # ffn linears, nn.Linear layout (out, in)
        ffn_w1=jax.random.normal(ks[5], (H, H), jnp.float32) * 0.05,
        ffn_b1=jax.random.normal(ks[6], (H,), jnp.float32) * 0.05,
        ffn_w2=jax.random.normal(ks[7], (H, H), jnp.float32) * 0.05,
        ffn_b2=jax.random.normal(ks[8], (H,), jnp.float32) * 0.05,
    )

    new_state, attn_out = autonomic_attention_block(state, t, params)
    jax.block_until_ready(attn_out)

    ref_state, ref_attn = reference_forward(state, t, params)
    for a, b in zip(new_state, ref_state):
        assert jnp.allclose(a, b, atol=1e-5, rtol=1e-5), "state mismatch"
    assert jnp.allclose(attn_out, ref_attn, atol=1e-5, rtol=1e-5), "attn mismatch"

    print("KERNEL_OK")
</pallas_src>

<mosaic_0001>
module attributes {stable_mosaic.version = 11 : i64} {
  func.func @_autonomic_block_kernel(%arg0: i32, %arg1: memref<5xf32, #tpu.memory_space<smem>>, %arg2: memref<16x32xf32, #tpu.memory_space<vmem>>, %arg3: memref<16x32xf32, #tpu.memory_space<vmem>>, %arg4: memref<16x32xf32, #tpu.memory_space<vmem>>, %arg5: memref<16x32xf32, #tpu.memory_space<vmem>>, %arg6: memref<16x1xf32, #tpu.memory_space<vmem>>, %arg7: memref<1x32xf32, #tpu.memory_space<vmem>>, %arg8: memref<16x32xf32, #tpu.memory_space<vmem>>, %arg9: memref<16x32xf32, #tpu.memory_space<vmem>>, %arg10: memref<16x32xf32, #tpu.memory_space<vmem>>, %arg11: memref<16x32xf32, #tpu.memory_space<vmem>>, %arg12: memref<16x1xf32, #tpu.memory_space<vmem>>, %arg13: memref<16x32xf32, #tpu.memory_space<vmem>>) attributes {dimension_semantics = [#tpu.dimension_semantics<parallel>], iteration_bounds = array<i64: 1>, scalar_prefetch = 0 : i64, scratch_operands = 0 : i64, tpu.core_type = #tpu.core_type<tc>, window_params = [{transform_indices = @transform_0, window_bounds = array<i64: 5>}, {transform_indices = @transform_1, window_bounds = array<i64: 16, 32>}, {transform_indices = @transform_2, window_bounds = array<i64: 16, 32>}, {transform_indices = @transform_3, window_bounds = array<i64: 16, 32>}, {transform_indices = @transform_4, window_bounds = array<i64: 16, 32>}, {transform_indices = @transform_5, window_bounds = array<i64: 16, 1>}, {pipeline_mode = #tpu.pipeline_mode<synchronous>, transform_indices = @transform_6, window_bounds = array<i64: 1, 32>}, {transform_indices = @transform_7, window_bounds = array<i64: 16, 32>}, {transform_indices = @transform_8, window_bounds = array<i64: 16, 32>}, {transform_indices = @transform_9, window_bounds = array<i64: 16, 32>}, {transform_indices = @transform_10, window_bounds = array<i64: 16, 32>}, {transform_indices = @transform_11, window_bounds = array<i64: 16, 1>}, {transform_indices = @transform_12, window_bounds = array<i64: 16, 32>}]} {
    %c0 = arith.constant 0 : index
    %0 = memref.load %arg1[%c0] : memref<5xf32, #tpu.memory_space<smem>>
    %c1 = arith.constant 1 : index
    %1 = memref.load %arg1[%c1] : memref<5xf32, #tpu.memory_space<smem>>
    %c2 = arith.constant 2 : index
    %2 = memref.load %arg1[%c2] : memref<5xf32, #tpu.memory_space<smem>>
    %c3 = arith.constant 3 : index
    %3 = memref.load %arg1[%c3] : memref<5xf32, #tpu.memory_space<smem>>
    %c4 = arith.constant 4 : index
    %4 = memref.load %arg1[%c4] : memref<5xf32, #tpu.memory_space<smem>>
    %c0_0 = arith.constant 0 : index
    %c0_1 = arith.constant 0 : index
    %5 = vector.load %arg2[%c0_0, %c0_1] : memref<16x32xf32, #tpu.memory_space<vmem>>, vector<16x32xf32>
    %c0_2 = arith.constant 0 : index
    %c0_3 = arith.constant 0 : index
    %6 = vector.load %arg3[%c0_2, %c0_3] : memref<16x32xf32, #tpu.memory_space<vmem>>, vector<16x32xf32>
    %c0_4 = arith.constant 0 : index
    %c0_5 = arith.constant 0 : index
    %7 = vector.load %arg4[%c0_4, %c0_5] : memref<16x32xf32, #tpu.memory_space<vmem>>, vector<16x32xf32>
    %c0_6 = arith.constant 0 : index
    %c0_7 = arith.constant 0 : index
    %8 = vector.load %arg5[%c0_6, %c0_7] : memref<16x32xf32, #tpu.memory_space<vmem>>, vector<16x32xf32>
    %c0_8 = arith.constant 0 : index
    %c0_9 = arith.constant 0 : index
    %9 = vector.load %arg6[%c0_8, %c0_9] : memref<16x1xf32, #tpu.memory_space<vmem>>, vector<16x1xf32>
    %10 = vector.broadcast %0 : f32 to vector<16x32xf32>
    %11 = arith.addf %5, %10 : vector<16x32xf32>
    %12 = arith.subf %5, %6 : vector<16x32xf32>
    %13 = arith.subf %7, %12 : vector<16x32xf32>
    %14 = vector.broadcast %2 : f32 to vector<16x32xf32>
    %15 = arith.mulf %14, %13 : vector<16x32xf32>
    %16 = arith.addf %11, %15 : vector<16x32xf32>
    %17 = vector.broadcast %1 : f32 to vector<16x32xf32>
    %18 = arith.subf %6, %17 : vector<16x32xf32>
    %19 = arith.subf %6, %5 : vector<16x32xf32>
    %20 = arith.subf %8, %19 : vector<16x32xf32>
    %21 = vector.broadcast %2 : f32 to vector<16x32xf32>
    %22 = arith.mulf %21, %20 : vector<16x32xf32>
    %23 = arith.addf %18, %22 : vector<16x32xf32>
    %24 = arith.subf %16, %23 : vector<16x32xf32>
    %25 = vector.broadcast %3 : f32 to vector<16x32xf32>
    %26 = arith.mulf %25, %24 : vector<16x32xf32>
    %27 = arith.subf %7, %26 : vector<16x32xf32>
    %28 = arith.addf %8, %26 : vector<16x32xf32>
    %29 = arith.mulf %24, %24 : vector<16x32xf32>
    %cst = arith.constant dense<0.000000e+00> : vector<16xf32>
    %30 = vector.multi_reduction <add>, %29, %cst [1] : vector<16x32xf32> to vector<16xf32>
    %31 = vector.shape_cast %30 : vector<16xf32> to vector<16x1xf32>
    %32 = math.sqrt %31 : vector<16x1xf32>
    %33 = arith.subf %32, %9 : vector<16x1xf32>
    %34 = vector.broadcast %4 : f32 to vector<16x1xf32>
    %35 = arith.mulf %34, %33 : vector<16x1xf32>
    %36 = arith.addf %9, %35 : vector<16x1xf32>
    %c0_10 = arith.constant 0 : index
    %c0_11 = arith.constant 0 : index
    %37 = vector.load %arg8[%c0_10, %c0_11] : memref<16x32xf32, #tpu.memory_space<vmem>>, vector<16x32xf32>
    tpu.vector_store %arg8[%c0_10, %c0_11], %16 {strides = array<i32>} : memref<16x32xf32, #tpu.memory_space<vmem>>, vector<16x32xf32>,
    %c0_12 = arith.constant 0 : index
    %c0_13 = arith.constant 0 : index
    %38 = vector.load %arg9[%c0_12, %c0_13] : memref<16x32xf32, #tpu.memory_space<vmem>>, vector<16x32xf32>
    tpu.vector_store %arg9[%c0_12, %c0_13], %23 {strides = array<i32>} : memref<16x32xf32, #tpu.memory_space<vmem>>, vector<16x32xf32>,
    %c0_14 = arith.constant 0 : index
    %c0_15 = arith.constant 0 : index
    %39 = vector.load %arg10[%c0_14, %c0_15] : memref<16x32xf32, #tpu.memory_space<vmem>>, vector<16x32xf32>
    tpu.vector_store %arg10[%c0_14, %c0_15], %27 {strides = array<i32>} : memref<16x32xf32, #tpu.memory_space<vmem>>, vector<16x32xf32>,
    %c0_16 = arith.constant 0 : index
    %c0_17 = arith.constant 0 : index
    %40 = vector.load %arg11[%c0_16, %c0_17] : memref<16x32xf32, #tpu.memory_space<vmem>>, vector<16x32xf32>
    tpu.vector_store %arg11[%c0_16, %c0_17], %28 {strides = array<i32>} : memref<16x32xf32, #tpu.memory_space<vmem>>, vector<16x32xf32>,
    %c0_18 = arith.constant 0 : index
    %c0_19 = arith.constant 0 : index
    %41 = vector.load %arg12[%c0_18, %c0_19] : memref<16x1xf32, #tpu.memory_space<vmem>>, vector<16x1xf32>
    tpu.vector_store %arg12[%c0_18, %c0_19], %36 {strides = array<i32>} : memref<16x1xf32, #tpu.memory_space<vmem>>, vector<16x1xf32>,
    %c0_20 = arith.constant 0 : index
    %c0_21 = arith.constant 0 : index
    %42 = vector.load %arg7[%c0_20, %c0_21] : memref<1x32xf32, #tpu.memory_space<vmem>>, vector<1x32xf32>
    %43 = vector.shape_cast %42 : vector<1x32xf32> to vector<1x32xf32>
    %44 = vector.broadcast %43 : vector<1x32xf32> to vector<16x32xf32>
    %c0_22 = arith.constant 0 : index
    %c0_23 = arith.constant 0 : index
    %45 = vector.load %arg13[%c0_22, %c0_23] : memref<16x32xf32, #tpu.memory_space<vmem>>, vector<16x32xf32>
    tpu.vector_store %arg13[%c0_22, %c0_23], %44 {strides = array<i32>} : memref<16x32xf32, #tpu.memory_space<vmem>>, vector<16x32xf32>,
    return
  }
  func.func @transform_0(%arg0: i32) -> i32 {
    %c0_i32 = arith.constant 0 : i32
    %c0_i32_0 = arith.constant 0 : i32
    return %c0_i32 : i32
  }
  func.func @transform_1(%arg0: i32) -> (i32, i32) {
    %c0_i32 = arith.constant 0 : i32
    %c0_i32_0 = arith.constant 0 : i32
    return %arg0, %c0_i32 : i32, i32
  }
  func.func @transform_2(%arg0: i32) -> (i32, i32) {
    %c0_i32 = arith.constant 0 : i32
    %c0_i32_0 = arith.constant 0 : i32
    return %arg0, %c0_i32 : i32, i32
  }
  func.func @transform_3(%arg0: i32) -> (i32, i32) {
    %c0_i32 = arith.constant 0 : i32
    %c0_i32_0 = arith.constant 0 : i32
    return %arg0, %c0_i32 : i32, i32
  }
  func.func @transform_4(%arg0: i32) -> (i32, i32) {
    %c0_i32 = arith.constant 0 : i32
    %c0_i32_0 = arith.constant 0 : i32
    return %arg0, %c0_i32 : i32, i32
  }
  func.func @transform_5(%arg0: i32) -> (i32, i32) {
    %c0_i32 = arith.constant 0 : i32
    %c0_i32_0 = arith.constant 0 : i32
    return %arg0, %c0_i32 : i32, i32
  }
  func.func @transform_6(%arg0: i32) -> (i32, i32) {
    %c0_i32 = arith.constant 0 : i32
    %c0_i32_0 = arith.constant 0 : i32
    %c0_i32_1 = arith.constant 0 : i32
    return %c0_i32, %c0_i32_0 : i32, i32
  }
  func.func @transform_7(%arg0: i32) -> (i32, i32) {
    %c0_i32 = arith.constant 0 : i32
    %c0_i32_0 = arith.constant 0 : i32
    return %arg0, %c0_i32 : i32, i32
  }
  func.func @transform_8(%arg0: i32) -> (i32, i32) {
    %c0_i32 = arith.constant 0 : i32
    %c0_i32_0 = arith.constant 0 : i32
    return %arg0, %c0_i32 : i32, i32
  }
  func.func @transform_9(%arg0: i32) -> (i32, i32) {
    %c0_i32 = arith.constant 0 : i32
    %c0_i32_0 = arith.constant 0 : i32
    return %arg0, %c0_i32 : i32, i32
  }
  func.func @transform_10(%arg0: i32) -> (i32, i32) {
    %c0_i32 = arith.constant 0 : i32
    %c0_i32_0 = arith.constant 0 : i32
    return %arg0, %c0_i32 : i32, i32
  }
  func.func @transform_11(%arg0: i32) -> (i32, i32) {
    %c0_i32 = arith.constant 0 : i32
    %c0_i32_0 = arith.constant 0 : i32
    return %arg0, %c0_i32 : i32, i32
  }
  func.func @transform_12(%arg0: i32) -> (i32, i32) {
    %c0_i32 = arith.constant 0 : i32
    %c0_i32_0 = arith.constant 0 : i32
    return %arg0, %c0_i32 : i32, i32
  }
}

</mosaic_0001>

<llo_original>
// kernel: tpu_custom_call.1
$region0: #{tpu_custom_call.1}
  #allocation0 [shape = 'u32[]', space=smem, size = 0x4, offset = 0x4, fixed_abs, tag = 'smem constant byte address 0x4 - core index']
  #allocation1 [shape = 'u32[72,128]{1,0:T(1,128)}', space=vmem, size = 0x9000, scoped, tag = 'internal scratch']
  %s0 = inlined_call_operand.vmem [shape: f32[5], index: 0, kind: input, shape index: {}]
  %s1 = inlined_call_operand.vmem [shape: f32[16,32], index: 1, kind: input, shape index: {}, may-alias: {1,7}]
  %s2 = inlined_call_operand.vmem [shape: f32[16,32], index: 2, kind: input, shape index: {}, may-alias: {2,8}]
  %s3 = inlined_call_operand.vmem [shape: f32[16,32], index: 3, kind: input, shape index: {}, may-alias: {3,9}]
  %s4 = inlined_call_operand.vmem [shape: f32[16,32], index: 4, kind: input, shape index: {}, may-alias: {4,10}]
  %s5 = inlined_call_operand.vmem [shape: f32[16,1], index: 5, kind: input, shape index: {}, may-alias: {5,11}]
  %s6 = inlined_call_operand.vmem [shape: f32[1,32], index: 6, kind: input, shape index: {}]
  %s7 = inlined_call_operand.vmem [shape: f32[16,32], index: 7, kind: output, shape index: {0}, may-alias: {1,7}]
  %s8 = inlined_call_operand.vmem [shape: f32[16,32], index: 8, kind: output, shape index: {1}, may-alias: {2,8}]
  %s9 = inlined_call_operand.vmem [shape: f32[16,32], index: 9, kind: output, shape index: {2}, may-alias: {3,9}]
  %s10 = inlined_call_operand.vmem [shape: f32[16,32], index: 10, kind: output, shape index: {3}, may-alias: {4,10}]
  %s11 = inlined_call_operand.vmem [shape: f32[16,1], index: 11, kind: output, shape index: {4}, may-alias: {5,11}]
  %s12 = inlined_call_operand.hbm [shape: f32[16,32], index: 12, kind: output, shape index: {5}]
  %13 = xla_tuple %s7, %s8, %s9, %s10, %s11, %s12
  %s14 = sld [smem:[#allocation0]]
  $region82: #{tpu_custom_call.1} parent=0
    _
  %s16 = ssub.s32 1, %s14
  %s17 = scalar_select 0, %s16, %s14
  $region1: #{tpu_custom_call.1} parent=0
    #allocation2 [shape = 'u8[512]{0}', space=smem, size = 0x200, scoped, tag = 'input window, operand 0, single buffered']
    #allocation3 [shape = 's32[1]{0}', space=sflag, size = 0x4, scoped, tag = 'scoped memory for tpu_custom_call.1']
    #allocation4 [shape = 's32[1]{0}', space=sflag, size = 0x4, scoped, tag = 'scoped memory for tpu_custom_call.1']
    #allocation5 [shape = 'u8[8192]{0}', space=vmem, size = 0x2000, scoped, tag = 'output window, operand 5, single buffered']
    %18 = vsyncpa [#allocation4], 0
    %19 = vsyncpa [#allocation3], 0
    // Predicated region
    $region2: #{tpu_custom_call.1} parent=1 // pred_check
      _
    $region3: #{tpu_custom_call.1} parent=1 // pred_check_branch
      %21 = sbr.rel (0) target = $region5
    $region4: #{tpu_custom_call.1} parent=1 // pred_region
      %23 = vsyncadd [#allocation4], 0
      %s25 = sshll.u32 %s0, 4
      %s26 = int_to_ptr.vmem [resolvable:$true] %s25
      %28 = dma.vmem_to_smem %s26, 16, [#allocation2], [#allocation4]
    $region5: #{tpu_custom_call.1} parent=1 // pred_fallthru
      _
    // Predicated region
    $region6: #{tpu_custom_call.1} parent=1 // pred_check
      _
    $region7: #{tpu_custom_call.1} parent=1 // pred_check_branch
      %30 = sbr.rel (0) target = $region9
    $region8: #{tpu_custom_call.1} parent=1 // pred_region
      _
    $region9: #{tpu_custom_call.1} parent=1 // pred_fallthru
      _
    // Predicated region
    $region10: #{tpu_custom_call.1} parent=1 // pred_check
      _
    $region11: #{tpu_custom_call.1} parent=1 // pred_check_branch
      %32 = sbr.rel (0) target = $region13
    $region12: #{tpu_custom_call.1} parent=1 // pred_region
      _
    $region13: #{tpu_custom_call.1} parent=1 // pred_fallthru
      _
    // Predicated region
    $region14: #{tpu_custom_call.1} parent=1 // pred_check
      _
    $region15: #{tpu_custom_call.1} parent=1 // pred_check_branch
      %34 = sbr.rel (0) target = $region17
    $region16: #{tpu_custom_call.1} parent=1 // pred_region
      _
    $region17: #{tpu_custom_call.1} parent=1 // pred_fallthru
      _
    // Predicated region
    $region18: #{tpu_custom_call.1} parent=1 // pred_check
      _
    $region19: #{tpu_custom_call.1} parent=1 // pred_check_branch
      %36 = sbr.rel (0) target = $region21
    $region20: #{tpu_custom_call.1} parent=1 // pred_region
      _
    $region21: #{tpu_custom_call.1} parent=1 // pred_fallthru
      _
    // Predicated region
    $region22: #{tpu_custom_call.1} parent=1 // pred_check
      _
    $region23: #{tpu_custom_call.1} parent=1 // pred_check_branch
      %38 = sbr.rel (0) target = $region25
    $region24: #{tpu_custom_call.1} parent=1 // pred_region
      _
    $region25: #{tpu_custom_call.1} parent=1 // pred_fallthru
      _
    // Predicated region
    $region26: #{tpu_custom_call.1} parent=1 // pred_check
      _
    $region27: #{tpu_custom_call.1} parent=1 // pred_check_branch
      %40 = sbr.rel (0) target = $region29
    $region28: #{tpu_custom_call.1} parent=1 // pred_region
      _
    $region29: #{tpu_custom_call.1} parent=1 // pred_fallthru
      _
    // Predicated region
    $region30: #{tpu_custom_call.1} parent=1 // pred_check
      _
    $region31: #{tpu_custom_call.1} parent=1 // pred_check_branch
      %42 = sbr.rel (0) target = $region33
    $region32: #{tpu_custom_call.1} parent=1 // pred_region
      %44 = dma.done [#allocation4], 16
    $region33: #{tpu_custom_call.1} parent=1 // pred_fallthru
      _
    %45 = sfence
    %s46 = sld [smem:[#allocation2]]
    %s47 = sld [smem:[#allocation2 + $0x1]]
    %s48 = sld [smem:[#allocation2 + $0x2]]
    %s49 = sld [smem:[#allocation2 + $0x3]]
    %s50 = sld [smem:[#allocation2 + $0x4]]
    %v51 = vld [vmem:[%s1] sm:$0xff]
    %v52 = vld [vmem:[%s1 + $0x8] sm:$0xff]
    %v53 = vld [vmem:[%s2] sm:$0xff]
    %v54 = vld [vmem:[%s2 + $0x8] sm:$0xff]
    %v55 = vld [vmem:[%s3] sm:$0xff]
    %v56 = vld [vmem:[%s3 + $0x8] sm:$0xff]
    %v57 = vld [vmem:[%s4] sm:$0xff]
    %v58 = vld [vmem:[%s4 + $0x8] sm:$0xff]
    %v59 = vld [vmem:[%s5] sm:$0xff]
    %v60 = vld [vmem:[%s5 + $0x8] sm:$0xff]
    %v61 = vstv %s46
    %v62 = vadd.f32 %v51, %v61
    %v63 = vadd.f32 %v52, %v61
    %v64 = vsub.f32 %v51, %v53
    %v65 = vsub.f32 %v52, %v54
    %v66 = vsub.f32 %v55, %v64
    %v67 = vsub.f32 %v56, %v65
    %v68 = vstv %s48
    %v69 = vmul.f32 %v68, %v66
    %v70 = vmul.f32 %v68, %v67
    %v71 = vadd.f32 %v62, %v69
    %v72 = vadd.f32 %v63, %v70
    %v73 = vstv %s47
    %v74 = vsub.f32 %v53, %v73
    %v75 = vsub.f32 %v54, %v73
    %v76 = vsub.f32 %v53, %v51
    %v77 = vsub.f32 %v54, %v52
    %v78 = vsub.f32 %v57, %v76
    %v79 = vsub.f32 %v58, %v77
    %v80 = vmul.f32 %v68, %v78
    %v81 = vmul.f32 %v68, %v79
    %v82 = vadd.f32 %v74, %v80
    %v83 = vadd.f32 %v75, %v81
    %v84 = vsub.f32 %v71, %v82
    %v85 = vsub.f32 %v72, %v83
    %v86 = vstv %s49
    %v87 = vmul.f32 %v86, %v84
    %v88 = vmul.f32 %v86, %v85
    %v89 = vsub.f32 %v55, %v87
    %v90 = vsub.f32 %v56, %v88
    %v91 = vadd.f32 %v57, %v87
    %v92 = vadd.f32 %v58, %v88
    %v93 = vmul.f32 %v84, %v84
    %v94 = vmul.f32 %v85, %v85
    %vm95 = vcmask 261120
    %v96 = vsel %vm95, %v93, 0.0
    %97 = vadd.xlane.f32.xlu0 %v96
    %v98 = vpop.xlane.xlu0 %97
    %v99 = vsel %vm95, %v94, 0.0
    %100 = vadd.xlane.f32.xlu0 %v99
    %v101 = vpop.xlane.xlu0 %100
    %v102 = vrsqrt.pop %v98
    %v103 = vmul.f32 %v102, %v98
    %v104 = vmul.f32 %v103, %v102
    %v105 = vmul.f32 0.5, %v104
    %v106 = vsub.f32 1.5, %v105
    %v107 = vmul.f32 %v102, %v106
    %v108 = vmul.f32 %v98, %v107
    %vm109 = vcmp.eq.f32.partialorder %v98, inf
    %v110 = vsel %vm109, %v98, %v108
    %vm111 = vcmp.eq.f32.partialorder %v98, 0.0
    %v112 = vand.u32 %v98, 2147483648
    %v113 = vsel %vm111, %v112, %v110
    %v114 = vrsqrt.pop %v101
    %v115 = vmul.f32 %v114, %v101
    %v116 = vmul.f32 %v115, %v114
    %v117 = vmul.f32 0.5, %v116
    %v118 = vsub.f32 1.5, %v117
    %v119 = vmul.f32 %v114, %v118
    %v120 = vmul.f32 %v101, %v119
    %vm121 = vcmp.eq.f32.partialorder %v101, inf
    %v122 = vsel %vm121, %v101, %v120
    %vm123 = vcmp.eq.f32.partialorder %v101, 0.0
    %v124 = vand.u32 %v101, 2147483648
    %v125 = vsel %vm123, %v124, %v122
    %v126 = vsub.f32 %v113, %v59
    %v127 = vsub.f32 %v125, %v60
    %v128 = vstv %s50
    %v129 = vmul.f32 %v128, %v126
    %v130 = vmul.f32 %v128, %v127
    %v131 = vadd.f32 %v59, %v129
    %v132 = vadd.f32 %v60, %v130
    %133 = vst.msk [vmem:[%s7] sm:$0xff] %vm95, %v71
    %134 = vst.msk [vmem:[%s7 + $0x8] sm:$0xff] %vm95, %v72
    %135 = vst.msk [vmem:[%s8] sm:$0xff] %vm95, %v82
    %136 = vst.msk [vmem:[%s8 + $0x8] sm:$0xff] %vm95, %v83
    %137 = vst.msk [vmem:[%s9] sm:$0xff] %vm95, %v89
    %138 = vst.msk [vmem:[%s9 + $0x8] sm:$0xff] %vm95, %v90
    %139 = vst.msk [vmem:[%s10] sm:$0xff] %vm95, %v91
    %140 = vst.msk [vmem:[%s10 + $0x8] sm:$0xff] %vm95, %v92
    %vm141 = vcmask 7168
    %142 = vst.msk [vmem:[%s11] sm:$0xff] %vm141, %v131
    %143 = vst.msk [vmem:[%s11 + $0x8] sm:$0xff] %vm141, %v132
    %v144 = vld [vmem:[%s6] sm:$0x1]
    %v146 = vperm.slane %v144, 0
    %148 = vst.msk [vmem:[#allocation5] sm:$0xff] %vm95, %v146
    %149 = vst.msk [vmem:[#allocation5 + $0x8] sm:$0xff] %vm95, %v146
    // Predicated region
    $region34: #{tpu_custom_call.1} parent=1 // pred_check
      _
    $region35: #{tpu_custom_call.1} parent=1 // pred_check_branch
      %151 = sbr.rel (0) target = $region37
    $region36: #{tpu_custom_call.1} parent=1 // pred_region
      _
    $region37: #{tpu_custom_call.1} parent=1 // pred_fallthru
      _
    // Predicated region
    $region38: #{tpu_custom_call.1} parent=1 // pred_check
      _
    $region39: #{tpu_custom_call.1} parent=1 // pred_check_branch
      %153 = sbr.rel (0) target = $region41
    $region40: #{tpu_custom_call.1} parent=1 // pred_region
      _
    $region41: #{tpu_custom_call.1} parent=1 // pred_fallthru
      _
    // Predicated region
    $region42: #{tpu_custom_call.1} parent=1 // pred_check
      _
    $region43: #{tpu_custom_call.1} parent=1 // pred_check_branch
      %155 = sbr.rel (0) target = $region45
    $region44: #{tpu_custom_call.1} parent=1 // pred_region
      _
    $region45: #{tpu_custom_call.1} parent=1 // pred_fallthru
      _
    // Predicated region
    $region46: #{tpu_custom_call.1} parent=1 // pred_check
      _
    $region47: #{tpu_custom_call.1} parent=1 // pred_check_branch
      %157 = sbr.rel (0) target = $region49
    $region48: #{tpu_custom_call.1} parent=1 // pred_region
      _
    $region49: #{tpu_custom_call.1} parent=1 // pred_fallthru
      _
    // Predicated region
    $region50: #{tpu_custom_call.1} parent=1 // pred_check
      _
    $region51: #{tpu_custom_call.1} parent=1 // pred_check_branch
      %159 = sbr.rel (0) target = $region53
    $region52: #{tpu_custom_call.1} parent=1 // pred_region
      _
    $region53: #{tpu_custom_call.1} parent=1 // pred_fallthru
      _
    // Predicated region
    $region54: #{tpu_custom_call.1} parent=1 // pred_check
      _
    $region55: #{tpu_custom_call.1} parent=1 // pred_check_branch
      %161 = sbr.rel (0) target = $region57
    $region56: #{tpu_custom_call.1} parent=1 // pred_region
      %163 = vsyncadd [#allocation3], 0
      %s164 = sshll.u32 [#allocation5], 4
      %s165 = int_to_ptr.vmem [resolvable:$true] %s164
      %s166 = sshll.u32 %s12, 4
      %s167 = int_to_ptr.hbm [resolvable:$true] %s166
      %172 = dma.vmem_to_hbm [thread:$0]  %s165, 256, %s167, [#allocation3], 128, 128, 8
    $region57: #{tpu_custom_call.1} parent=1 // pred_fallthru
      _
    // Predicated region
    $region58: #{tpu_custom_call.1} parent=1 // pred_check
      _
    $region59: #{tpu_custom_call.1} parent=1 // pred_check_branch
      %174 = sbr.rel (0) target = $region61
    $region60: #{tpu_custom_call.1} parent=1 // pred_region
      _
    $region61: #{tpu_custom_call.1} parent=1 // pred_fallthru
      _
    // Predicated region
    $region62: #{tpu_custom_call.1} parent=1 // pred_check
      _
    $region63: #{tpu_custom_call.1} parent=1 // pred_check_branch
      %176 = sbr.rel (0) target = $region65
    $region64: #{tpu_custom_call.1} parent=1 // pred_region
      _
    $region65: #{tpu_custom_call.1} parent=1 // pred_fallthru
      _
    // Predicated region
    $region66: #{tpu_custom_call.1} parent=1 // pred_check
      _
    $region67: #{tpu_custom_call.1} parent=1 // pred_check_branch
      %178 = sbr.rel (0) target = $region69
    $region68: #{tpu_custom_call.1} parent=1 // pred_region
      _
    $region69: #{tpu_custom_call.1} parent=1 // pred_fallthru
      _
    // Predicated region
    $region70: #{tpu_custom_call.1} parent=1 // pred_check
      _
    $region71: #{tpu_custom_call.1} parent=1 // pred_check_branch
      %180 = sbr.rel (0) target = $region73
    $region72: #{tpu_custom_call.1} parent=1 // pred_region
      _
    $region73: #{tpu_custom_call.1} parent=1 // pred_fallthru
      _
    // Predicated region
    $region74: #{tpu_custom_call.1} parent=1 // pred_check
      _
    $region75: #{tpu_custom_call.1} parent=1 // pred_check_branch
      %182 = sbr.rel (0) target = $region77
    $region76: #{tpu_custom_call.1} parent=1 // pred_region
      _
    $region77: #{tpu_custom_call.1} parent=1 // pred_fallthru
      _
    // Predicated region
    $region78: #{tpu_custom_call.1} parent=1 // pred_check
      _
    $region79: #{tpu_custom_call.1} parent=1 // pred_check_branch
      %184 = sbr.rel (0) target = $region81
    $region80: #{tpu_custom_call.1} parent=1 // pred_region
      %186 = dma.done [#allocation3], 256
    $region81: #{tpu_custom_call.1} parent=1 // pred_fallthru
      _
    %187 = vsyncpa [#allocation3], 1
    %188 = vsyncpa [#allocation4], 1

</llo_original>
